<compile_context>
chip_gen: v6e
topology: v6e:2x2x1
jax: 0.10.0
libtpu: 0.0.40
codegen_flags: <defaults>
</compile_context>

<pallas_src>
import jax
import jax.numpy as jnp
from jax.experimental import pallas as pl
from jax.experimental.pallas import tpu as pltpu

HIDDEN = 180       # matches nn.Linear(input_dim, 180)
_LANES = 128
_SUBLANES = 8


def _round_up(x, m):
    return (x + m - 1) // m * m


def _classifier_kernel(x_ref, w1_ref, b1_ref, w2_ref, b2_ref, o_ref):
    # Layer 1: (TM, D) @ (D, Hp) on the MXU, f32 accumulation.
    h = jnp.dot(x_ref[...], w1_ref[...], preferred_element_type=jnp.float32)
    h = jnp.maximum(h + b1_ref[...], 0.0)             # bias + ReLU on the VPU

    # Layer 2 (single output unit): VPU multiply + XLU lane reduction.  The
    # rank-reducing sum leaves the TM per-row scalars along lanes, so the
    # (1, TM) output row is lane-dense -> dense stores + contiguous writeback.
    z = jnp.sum(h * w2_ref[...], axis=-1)              # (TM,)
    z = z[None, :] + b2_ref[0, 0]                      # (1, TM), SMEM scalar bias
    o_ref[...] = jax.nn.sigmoid(z)                     # EUP transcendental


def classifier_forward(x, w1, b1, w2, b2, *, tile_m=1024,
                       compute_dtype=jnp.float32):
    """Forward pass of Classifier.

    x : (B, D) f32
    w1: (D, HIDDEN)   (pre-transposed vs. PyTorch's (HIDDEN, D))
    b1: (1, HIDDEN)
    w2: (1, HIDDEN)   (row vector; the second layer has one output unit)
    b2: (1, 1)
    returns: (B, 1) f32
    """
    B, D = x.shape
    assert w1.shape == (D, HIDDEN)
    assert b1.shape == (1, HIDDEN)
    assert w2.shape == (1, HIDDEN)
    assert b2.shape == (1, 1)

    # Zero-pad hidden dim to a lane multiple (exact: padded cols contribute 0).
    hp = _round_up(HIDDEN, _LANES)
    w1p = jnp.pad(w1, ((0, 0), (0, hp - HIDDEN)))
    b1p = jnp.pad(b1, ((0, 0), (0, hp - HIDDEN)))
    w2p = jnp.pad(w2, ((0, 0), (0, hp - HIDDEN)))

    # Optional bf16 inputs for the first matmul (accumulation stays f32).
    if compute_dtype != jnp.float32:
        x = x.astype(compute_dtype)
        w1p = w1p.astype(compute_dtype)

    # Batch tiling: keep the double-buffered x tiles well inside scoped VMEM.
    max_tm_vmem = max(_SUBLANES, (8 * 1024 * 1024) // (max(D, 1) * 4 * 2))
    tm = max(_SUBLANES, min(int(tile_m), max_tm_vmem))
    bp_sub = _round_up(B, _SUBLANES)
    if tm >= bp_sub:
        tm = bp_sub                      # single tile: block == full batch
    else:
        tm = _round_up(tm, _LANES)       # multi-tile: lane-aligned output rows
    bp = _round_up(B, tm)
    if bp != B:
        x = jnp.pad(x, ((0, bp - B), (0, 0)))
    grid = (bp // tm,)

    out = pl.pallas_call(
        _classifier_kernel,
        out_shape=jax.ShapeDtypeStruct((1, bp), jnp.float32),
        grid=grid,
        in_specs=[
            pl.BlockSpec((tm, D), lambda i: (i, 0)),             # x: batch-tiled
            pl.BlockSpec((D, hp), lambda i: (0, 0)),             # w1: resident
            pl.BlockSpec((1, hp), lambda i: (0, 0)),             # b1: resident
            pl.BlockSpec((1, hp), lambda i: (0, 0)),             # w2: resident
            pl.BlockSpec(memory_space=pltpu.MemorySpace.SMEM),   # b2: SMEM scalar
        ],
        out_specs=pl.BlockSpec((1, tm), lambda i: (0, i)),       # lane-dense row
        compiler_params=pltpu.CompilerParams(
            # Batch tiles are independent -> megacore sharding on v7x.
            dimension_semantics=("parallel",),
            # Chip-safe (<= scoped VMEM on v5e/v6e/v7x); actual use is a few MiB.
            vmem_limit_bytes=32 * 1024 * 1024,
        ),
    )(x, w1p, b1p, w2p, b2)

    # (1, bp) lane-dense row -> (B, 1) column; cheap wrapper-side reshape.
    return jnp.reshape(out, (bp, 1))[:B]


def init_params(key, input_dim):
    """Deterministic init mirroring nn.Linear's shapes (Kaiming-uniform-ish)."""
    k1, k2, k3, k4 = jax.random.split(key, 4)
    bound1 = 1.0 / jnp.sqrt(jnp.float32(input_dim))
    bound2 = 1.0 / jnp.sqrt(jnp.float32(HIDDEN))
    w1 = jax.random.uniform(k1, (input_dim, HIDDEN), jnp.float32, -bound1, bound1)
    b1 = jax.random.uniform(k2, (1, HIDDEN), jnp.float32, -bound1, bound1)
    w2 = jax.random.uniform(k3, (1, HIDDEN), jnp.float32, -bound2, bound2)
    b2 = jax.random.uniform(k4, (1, 1), jnp.float32, -bound2, bound2)
    return w1, b1, w2, b2


def reference_forward(x, w1, b1, w2, b2):
    h = jnp.maximum(x @ w1 + b1, 0.0)
    return jax.nn.sigmoid(h @ w2.T + b2)


if __name__ == "__main__":
    key = jax.random.PRNGKey(0)
    kx, kp, kx2 = jax.random.split(key, 3)

    input_dim = 32
    w1, b1, w2, b2 = init_params(kp, input_dim)

    # Small batch: single tile, f32 path, exact match vs. reference.
    x_small = jax.random.normal(kx, (8, input_dim), dtype=jnp.float32)
    out_small = jax.block_until_ready(classifier_forward(x_small, w1, b1, w2, b2))
    ref_small = reference_forward(x_small, w1, b1, w2, b2)
    assert out_small.shape == (8, 1)
    assert jnp.allclose(out_small, ref_small, atol=1e-5, rtol=1e-5)

    # Ragged batch: exercises the batch grid (3 tiles) + tail padding.
    x_big = jax.random.normal(kx2, (300, input_dim), dtype=jnp.float32)
    out_big = jax.block_until_ready(
        classifier_forward(x_big, w1, b1, w2, b2, tile_m=128))
    ref_big = reference_forward(x_big, w1, b1, w2, b2)
    assert out_big.shape == (300, 1)
    assert jnp.allclose(out_big, ref_big, atol=1e-5, rtol=1e-5)

    # Optional bf16 input path for the first matmul (f32 accumulate).
    out_bf16 = jax.block_until_ready(
        classifier_forward(x_big, w1, b1, w2, b2, tile_m=128,
                           compute_dtype=jnp.bfloat16))
    assert jnp.allclose(out_bf16, ref_big, atol=2e-2)

    print("KERNEL_OK")
</pallas_src>

<mosaic_0001>
module attributes {stable_mosaic.version = 11 : i64} {
  func.func @_classifier_kernel(%arg0: i32, %arg1: memref<8x32xf32, #tpu.memory_space<vmem>>, %arg2: memref<32x256xf32, #tpu.memory_space<vmem>>, %arg3: memref<1x256xf32, #tpu.memory_space<vmem>>, %arg4: memref<1x256xf32, #tpu.memory_space<vmem>>, %arg5: memref<1x1xf32, #tpu.memory_space<smem>>, %arg6: memref<1x8xf32, #tpu.memory_space<vmem>>) attributes {dimension_semantics = [#tpu.dimension_semantics<parallel>], iteration_bounds = array<i64: 1>, scalar_prefetch = 0 : i64, scratch_operands = 0 : i64, tpu.core_type = #tpu.core_type<tc>, window_params = [{transform_indices = @transform_0, window_bounds = array<i64: 8, 32>}, {pipeline_mode = #tpu.pipeline_mode<synchronous>, transform_indices = @transform_1, window_bounds = array<i64: 32, 256>}, {pipeline_mode = #tpu.pipeline_mode<synchronous>, transform_indices = @transform_2, window_bounds = array<i64: 1, 256>}, {pipeline_mode = #tpu.pipeline_mode<synchronous>, transform_indices = @transform_3, window_bounds = array<i64: 1, 256>}, {transform_indices = @transform_4, window_bounds = array<i64: 1, 1>}, {transform_indices = @transform_5, window_bounds = array<i64: 1, 8>}]} {
    %c0 = arith.constant 0 : index
    %c0_0 = arith.constant 0 : index
    %0 = vector.load %arg1[%c0, %c0_0] : memref<8x32xf32, #tpu.memory_space<vmem>>, vector<8x32xf32>
    %c0_1 = arith.constant 0 : index
    %c0_2 = arith.constant 0 : index
    %1 = vector.load %arg2[%c0_1, %c0_2] : memref<32x256xf32, #tpu.memory_space<vmem>>, vector<32x256xf32>
    %cst = arith.constant dense<0.000000e+00> : vector<8x256xf32>
    %2 = tpu.matmul %0, %1, %cst {dimension_numbers = #tpu.dot_dimension_numbers<[1], [0], [0], [1], [0, 0, 1, 1], [], []>} : vector<8x32xf32>, vector<32x256xf32>, vector<8x256xf32> -> vector<8x256xf32>
    %c0_3 = arith.constant 0 : index
    %c0_4 = arith.constant 0 : index
    %3 = vector.load %arg3[%c0_3, %c0_4] : memref<1x256xf32, #tpu.memory_space<vmem>>, vector<1x256xf32>
    %4 = vector.broadcast %3 : vector<1x256xf32> to vector<8x256xf32>
    %5 = arith.addf %2, %4 : vector<8x256xf32>
    %cst_5 = arith.constant 0.000000e+00 : f32
    %6 = vector.broadcast %cst_5 : f32 to vector<8x256xf32>
    %7 = arith.maximumf %5, %6 : vector<8x256xf32>
    %c0_6 = arith.constant 0 : index
    %c0_7 = arith.constant 0 : index
    %8 = vector.load %arg4[%c0_6, %c0_7] : memref<1x256xf32, #tpu.memory_space<vmem>>, vector<1x256xf32>
    %9 = vector.broadcast %8 : vector<1x256xf32> to vector<8x256xf32>
    %10 = arith.mulf %7, %9 : vector<8x256xf32>
    %cst_8 = arith.constant dense<0.000000e+00> : vector<8xf32>
    %11 = vector.multi_reduction <add>, %10, %cst_8 [1] : vector<8x256xf32> to vector<8xf32>
    %12 = vector.shape_cast %11 : vector<8xf32> to vector<1x8xf32>
    %c0_9 = arith.constant 0 : index
    %c0_10 = arith.constant 0 : index
    %13 = memref.load %arg5[%c0_9, %c0_10] : memref<1x1xf32, #tpu.memory_space<smem>>
    %14 = vector.broadcast %13 : f32 to vector<1x8xf32>
    %15 = arith.addf %12, %14 : vector<1x8xf32>
    %16 = arith.negf %15 : vector<1x8xf32>
    %17 = math.exp %16 : vector<1x8xf32>
    %cst_11 = arith.constant 1.000000e+00 : f32
    %18 = vector.broadcast %cst_11 : f32 to vector<1x8xf32>
    %19 = arith.addf %18, %17 : vector<1x8xf32>
    %20 = arith.divf %18, %19 : vector<1x8xf32>
    %c0_12 = arith.constant 0 : index
    %c0_13 = arith.constant 0 : index
    %21 = vector.load %arg6[%c0_12, %c0_13] : memref<1x8xf32, #tpu.memory_space<vmem>>, vector<1x8xf32>
    tpu.vector_store %arg6[%c0_12, %c0_13], %20 {strides = array<i32>} : memref<1x8xf32, #tpu.memory_space<vmem>>, vector<1x8xf32>,
    return
  }
  func.func @transform_0(%arg0: i32) -> (i32, i32) {
    %c0_i32 = arith.constant 0 : i32
    %c0_i32_0 = arith.constant 0 : i32
    return %arg0, %c0_i32 : i32, i32
  }
  func.func @transform_1(%arg0: i32) -> (i32, i32) {
    %c0_i32 = arith.constant 0 : i32
    %c0_i32_0 = arith.constant 0 : i32
    %c0_i32_1 = arith.constant 0 : i32
    return %c0_i32, %c0_i32_0 : i32, i32
  }
  func.func @transform_2(%arg0: i32) -> (i32, i32) {
    %c0_i32 = arith.constant 0 : i32
    %c0_i32_0 = arith.constant 0 : i32
    %c0_i32_1 = arith.constant 0 : i32
    return %c0_i32, %c0_i32_0 : i32, i32
  }
  func.func @transform_3(%arg0: i32) -> (i32, i32) {
    %c0_i32 = arith.constant 0 : i32
    %c0_i32_0 = arith.constant 0 : i32
    %c0_i32_1 = arith.constant 0 : i32
    return %c0_i32, %c0_i32_0 : i32, i32
  }
  func.func @transform_4(%arg0: i32) -> (i32, i32) {
    %c0_i32 = arith.constant 0 : i32
    %c0_i32_0 = arith.constant 0 : i32
    %c0_i32_1 = arith.constant 0 : i32
    return %c0_i32, %c0_i32_0 : i32, i32
  }
  func.func @transform_5(%arg0: i32) -> (i32, i32) {
    %c0_i32 = arith.constant 0 : i32
    %c0_i32_0 = arith.constant 0 : i32
    return %c0_i32, %arg0 : i32, i32
  }
}

</mosaic_0001>

<llo_original>
// kernel: tpu_custom_call.1
$region0: #{tpu_custom_call.1}
  #allocation0 [shape = 'u32[]', space=smem, size = 0x4, offset = 0x4, fixed_abs, tag = 'smem constant byte address 0x4 - core index']
  #allocation1 [shape = 'u32[144,128]{1,0:T(1,128)}', space=vmem, size = 0x12000, scoped, tag = 'internal scratch']
  #allocation2 [shape = 'f32[1,1]{1,0:T(1,128)S(6)}', space=smem, size = 0x200, scoped, tag = 'scoped memory for tpu_custom_call.1']
  %s0 = inlined_call_operand.hbm [shape: f32[8,32], index: 0, kind: input, shape index: {}]
  %s1 = inlined_call_operand.hbm [shape: f32[32,256], index: 1, kind: input, shape index: {}]
  %s2 = inlined_call_operand.vmem [shape: f32[1,256], index: 2, kind: input, shape index: {}]
  %s3 = inlined_call_operand.vmem [shape: f32[1,256], index: 3, kind: input, shape index: {}]
  %s4 = inlined_call_operand.<no memory space> [shape: f32[1,1], index: 4, kind: input, shape index: {}]
  %s5 = inlined_call_operand.hbm [shape: f32[1,8], index: 5, kind: output, shape index: {}]
  %s6 = sld [smem:[#allocation0]]
  $region38: #{tpu_custom_call.1} parent=0
    _
  %s8 = ssub.s32 1, %s6
  %s9 = scalar_select 0, %s8, %s6
  %10 = sst [smem:[#allocation2]] %s4
  $region1: #{tpu_custom_call.1} parent=0
    #allocation3 [shape = 'u8[4096]{0}', space=vmem, size = 0x1000, scoped, tag = 'input window, operand 0, single buffered']
    #allocation4 [shape = 's32[1]{0}', space=sflag, size = 0x4, scoped, tag = 'scoped memory for tpu_custom_call.1']
    #allocation5 [shape = 's32[1]{0}', space=sflag, size = 0x4, scoped, tag = 'scoped memory for tpu_custom_call.1']
    #allocation6 [shape = 'u8[32768]{0}', space=vmem, size = 0x8000, scoped, tag = 'input window, operand 1, single buffered']
    #allocation7 [shape = 's32[1]{0}', space=sflag, size = 0x4, scoped, tag = 'scoped memory for tpu_custom_call.1']
    #allocation8 [shape = 'u8[512]{0}', space=vmem, size = 0x400, scoped, tag = 'output window, operand 0, single buffered']
    %11 = vsyncpa [#allocation4], 0
    %12 = vsyncpa [#allocation7], 0
    %13 = vsyncpa [#allocation5], 0
    // Predicated region
    $region2: #{tpu_custom_call.1} parent=1 // pred_check
      _
    $region3: #{tpu_custom_call.1} parent=1 // pred_check_branch
      %15 = sbr.rel (0) target = $region5
    $region4: #{tpu_custom_call.1} parent=1 // pred_region
      %s17 = ssub.s32 128, 128
      %18 = vsyncadd [#allocation4], %s17
      %s20 = sshll.u32 [#allocation3], 4
      %s21 = int_to_ptr.vmem [resolvable:$true] %s20
      %23 = dma.hbm_to_vmem [thread:$0]  %s0, 128, %s21, [#allocation4]
    $region5: #{tpu_custom_call.1} parent=1 // pred_fallthru
      _
    // Predicated region
    $region6: #{tpu_custom_call.1} parent=1 // pred_check
      _
    $region7: #{tpu_custom_call.1} parent=1 // pred_check_branch
      %25 = sbr.rel (0) target = $region9
    $region8: #{tpu_custom_call.1} parent=1 // pred_region
      %s27 = ssub.s32 1024, 1024
      %28 = vsyncadd [#allocation7], %s27
      %s29 = sshll.u32 [#allocation6], 4
      %s30 = int_to_ptr.vmem [resolvable:$true] %s29
      %35 = dma.hbm_to_vmem [thread:$0]  %s1, 1024, %s30, [#allocation7], 256, 256, 16
    $region9: #{tpu_custom_call.1} parent=1 // pred_fallthru
      _
    // Predicated region
    $region10: #{tpu_custom_call.1} parent=1 // pred_check
      _
    $region11: #{tpu_custom_call.1} parent=1 // pred_check_branch
      %37 = sbr.rel (0) target = $region13
    $region12: #{tpu_custom_call.1} parent=1 // pred_region
      _
    $region13: #{tpu_custom_call.1} parent=1 // pred_fallthru
      _
    // Predicated region
    $region14: #{tpu_custom_call.1} parent=1 // pred_check
      _
    $region15: #{tpu_custom_call.1} parent=1 // pred_check_branch
      %39 = sbr.rel (0) target = $region17
    $region16: #{tpu_custom_call.1} parent=1 // pred_region
      _
    $region17: #{tpu_custom_call.1} parent=1 // pred_fallthru
      _
    // Predicated region
    $region18: #{tpu_custom_call.1} parent=1 // pred_check
      _
    $region19: #{tpu_custom_call.1} parent=1 // pred_check_branch
      %41 = sbr.rel (0) target = $region21
    $region20: #{tpu_custom_call.1} parent=1 // pred_region
      _
    $region21: #{tpu_custom_call.1} parent=1 // pred_fallthru
      _
    // Predicated region
    $region22: #{tpu_custom_call.1} parent=1 // pred_check
      _
    $region23: #{tpu_custom_call.1} parent=1 // pred_check_branch
      %43 = sbr.rel (0) target = $region25
    $region24: #{tpu_custom_call.1} parent=1 // pred_region
      %44 = dma.done [#allocation4], 128
    $region25: #{tpu_custom_call.1} parent=1 // pred_fallthru
      _
    // Predicated region
    $region26: #{tpu_custom_call.1} parent=1 // pred_check
      _
    $region27: #{tpu_custom_call.1} parent=1 // pred_check_branch
      %46 = sbr.rel (0) target = $region29
    $region28: #{tpu_custom_call.1} parent=1 // pred_region
      %47 = dma.done [#allocation7], 1024
    $region29: #{tpu_custom_call.1} parent=1 // pred_fallthru
      _
    %v48 = vld [vmem:[#allocation3] sm:$0xff]
    %v49 = vld [vmem:[#allocation6] sm:$0xff]
    %v50 = vld [vmem:[#allocation6 + $0x8] sm:$0xff]
    %v51 = vld [vmem:[#allocation6 + $0x10] sm:$0xff]
    %v52 = vld [vmem:[#allocation6 + $0x18] sm:$0xff]
    %v53 = vld [vmem:[#allocation6 + $0x20] sm:$0xff]
    %v54 = vld [vmem:[#allocation6 + $0x28] sm:$0xff]
    %v55 = vld [vmem:[#allocation6 + $0x30] sm:$0xff]
    %v56 = vld [vmem:[#allocation6 + $0x38] sm:$0xff]
    %v57 = vld [vmem:[%s2] sm:$0x3]
    %v59 = vlaneseq
    %v60 = vshrl.u32 %v59, 7
    %v61 = vsub.s32 0, %v60
    %v62 = vrot.slane %v57, %v61
    %v63 = vlaneseq
    %v64 = vshrl.u32 %v63, 7
    %v65 = vsub.s32 1, %v64
    %v66 = vrot.slane %v57, %v65
    %vm69 = vcmask 261120
    %v71 = vsel %vm69, %v48, 0
    %73 = vmatprep.subr.mxu0 0.0
    %74 = vmatpush1.msra.mxu0 0.0
    %75 = vmatprep.subr.mxu0 0.0
    %76 = vmatpush1.msra.mxu0 0.0
    %77 = vmatprep.subr.mxu0 0.0
    %78 = vmatpush1.msra.mxu0 0.0
    %79 = vmatprep.subr.mxu0 0.0
    %80 = vmatpush1.msra.mxu0 0.0
    %81 = vmatprep.subr.mxu0 0.0
    %82 = vmatpush1.msra.mxu0 0.0
    %83 = vmatprep.subr.mxu0 0.0
    %84 = vmatpush1.msra.mxu0 0.0
    %85 = vmatprep.subr.mxu0 0.0
    %86 = vmatpush1.msra.mxu0 0.0
    %87 = vmatprep.subr.mxu0 0.0
    %88 = vmatpush1.msra.mxu0 0.0
    %89 = vmatprep.subr.mxu0 0.0
    %90 = vmatpush1.msra.mxu0 0.0
    %91 = vmatprep.subr.mxu0 0.0
    %92 = vmatpush1.msra.mxu0 0.0
    %93 = vmatprep.subr.mxu0 0.0
    %94 = vmatpush1.msra.mxu0 0.0
    %95 = vmatprep.subr.mxu0 0.0
    %96 = vmatpush1.msra.mxu0 0.0
    %97 = vmatprep.subr.mxu0 %v56
    %98 = vmatpush1.msra.mxu0 %v55
    %99 = vmatprep.subr.mxu0 %v54
    %100 = vmatpush1.msra.mxu0 %v53
    %101 = vmatprep.subr.mxu0 %v52
    %102 = vmatpush1.msra.mxu0 %v51
    %103 = vmatprep.subr.mxu0 %v50
    %104 = vmatpush1.msra.mxu0 %v49
    %105 = vmatprep.subr.mxu0 0.0
    %106 = vmatpush2.msra.mxu0 0.0
    %107 = vmatprep.subr.mxu0 0.0
    %108 = vmatpush2.msra.mxu0 0.0
    %109 = vmatprep.subr.mxu0 0.0
    %110 = vmatpush2.msra.mxu0 0.0
    %111 = vmatprep.subr.mxu0 0.0
    %112 = vmatpush2.msra.mxu0 0.0
    %113 = vmatprep.subr.mxu0 0.0
    %114 = vmatpush2.msra.mxu0 0.0
    %115 = vmatprep.subr.mxu0 0.0
    %116 = vmatpush2.msra.mxu0 0.0
    %117 = vmatprep.subr.mxu0 0.0
    %118 = vmatpush2.msra.mxu0 0.0
    %119 = vmatprep.subr.mxu0 0.0
    %120 = vmatpush2.msra.mxu0 0.0
    %121 = vmatprep.subr.mxu0 0.0
    %122 = vmatpush2.msra.mxu0 0.0
    %123 = vmatprep.subr.mxu0 0.0
    %124 = vmatpush2.msra.mxu0 0.0
    %125 = vmatprep.subr.mxu0 0.0
    %126 = vmatpush2.msra.mxu0 0.0
    %127 = vmatprep.subr.mxu0 0.0
    %128 = vmatpush2.msra.mxu0 0.0
    %129 = vmatprep.subr.mxu0 0.0
    %130 = vmatpush2.msra.mxu0 0.0
    %131 = vmatprep.subr.mxu0 0.0
    %132 = vmatpush2.msra.mxu0 0.0
    %133 = vmatprep.subr.mxu0 0.0
    %134 = vmatpush2.msra.mxu0 0.0
    %135 = vmatprep.subr.mxu0 0.0
    %136 = vmatpush2.msra.mxu0 0.0
    %137 = vmatprep.mubr.f32.mxu0 0.0
    %138 = vmatmul.mubr.f32.gmra.mxu0 %v71
    %v139 = vpop.f32.mrf.mxu0
    %v140 = vadd.f32 %v62, %v139
    %v141 = vpop.f32.mrf.mxu0
    %v142 = vadd.f32 %v66, %v141
    %143 = vdwg.mxu0
    %v144 = vmax.f32 %v140, 0.0
    %v145 = vmax.f32 %v142, 0.0
    %v146 = vld [vmem:[%s3] sm:$0x3]
    %v148 = vlaneseq
    %v149 = vshrl.u32 %v148, 7
    %v150 = vsub.s32 0, %v149
    %v151 = vrot.slane %v146, %v150
    %v152 = vlaneseq
    %v153 = vshrl.u32 %v152, 7
    %v154 = vsub.s32 1, %v153
    %v155 = vrot.slane %v146, %v154
    %v158 = vmul.f32 %v144, %v151
    %v159 = vmul.f32 %v145, %v155
    %v160 = vadd.f32 %v158, %v159
    %161 = vadd.xlane.f32.xlu0 %v160
    %v162 = vpop.xlane.xlu0 %161
    %s163 = sld [smem:[#allocation2]]
    %v164 = vstv %s163
    %v165 = vadd.f32 %v162, %v164
    %v166 = vxor.u32 %v165, 2147483648
    %v167 = vmul.f32 %v166, 1.442695
    %v168 = vpow.pop %v167
    %v169 = vadd.f32 %v168, 1.0
    %v170 = vrcp.pop %v169
    %v171 = vmul.f32 1.0, %v170
    %v173 = vlaneseq
    %v174 = vand.u32 %v173, 127
    %v175 = vlaneseq
    %v176 = vshrl.u32 %v175, 7
    %v177 = vsub.s32 %v174, %v176
    %v178 = vrot.slane %v171, %v177
    %vm180 = vcmask 57344
    %181 = vst.msk [vmem:[#allocation8] sm:$0x1] %vm180, %v178
    // Predicated region
    $region30: #{tpu_custom_call.1} parent=1 // pred_check
      _
    $region31: #{tpu_custom_call.1} parent=1 // pred_check_branch
      %183 = sbr.rel (0) target = $region33
    $region32: #{tpu_custom_call.1} parent=1 // pred_region
      %s185 = ssub.s32 16, 16
      %186 = vsyncadd [#allocation5], %s185
      %s188 = sshll.u32 [#allocation8], 4
      %s189 = int_to_ptr.vmem [resolvable:$true] %s188
      %191 = dma.vmem_to_hbm [thread:$0]  %s189, 16, %s5, [#allocation5]
    $region33: #{tpu_custom_call.1} parent=1 // pred_fallthru
      _
    // Predicated region
    $region34: #{tpu_custom_call.1} parent=1 // pred_check
      _
    $region35: #{tpu_custom_call.1} parent=1 // pred_check_branch
      %193 = sbr.rel (0) target = $region37
    $region36: #{tpu_custom_call.1} parent=1 // pred_region
      %194 = dma.done [#allocation5], 16
    $region37: #{tpu_custom_call.1} parent=1 // pred_fallthru
      _
    %195 = vsyncpa [#allocation4], 1
    %196 = vsyncpa [#allocation7], 1
    %197 = vsyncpa [#allocation5], 1

</llo_original>
